<compile_context>
chip_gen: v7x
topology: tpu7x:2x2x1
jax: 0.10.0
libtpu: 0.0.40
codegen_flags: <defaults>
</compile_context>

<pallas_src>
import functools

import jax
import jax.numpy as jnp
from jax.experimental import pallas as pl
from jax.experimental.pallas import tpu as pltpu

MECHANISM_NAMES = (
    "repression", "projection", "denial", "sublimation",
    "rationalization", "displacement", "regression",
)

IN_DIM = 398
IN_PAD = 512          # 398 zero-padded to a multiple of 128 (clean MXU K)
HID1 = 256
HID2 = 128
N_MECH = len(MECHANISM_NAMES)
OUT_PAD = 128         # 7 heads zero-padded to a lane-dense output slab
VEC_W = HID1          # width of the packed bias/gamma/beta buffer
LN_EPS = 1e-5
MIN_TB = 16           # bf16 sublane tile on the batch axis

# rows of the packed (8, VEC_W) vector buffer
_ROW_B1, _ROW_G1, _ROW_BE1, _ROW_B2, _ROW_G2, _ROW_BE2, _ROW_BM = range(7)


def _round_up(x, m):
    return ((x + m - 1) // m) * m


def _plan_tiles(b, block_b):
    """Pick (tile_rows, padded_batch). Tiles are multiples of 16 (bf16 sublane
    tiling); when the batch spans >= 2 minimum tiles we force >= 2 grid steps
    so v7x's two TensorCores both get work under dimension_semantics=parallel."""
    bp = _round_up(max(b, MIN_TB), MIN_TB)
    tb = min(_round_up(max(block_b, MIN_TB), MIN_TB), bp)
    if tb >= bp and bp >= 2 * MIN_TB:
        tb = _round_up(bp // 2, MIN_TB)
    bp = _round_up(bp, tb)
    return tb, bp


def _gelu_exact(x):
    # PyTorch nn.GELU() default: exact erf-based GELU (f32).
    return 0.5 * x * (1.0 + jax.lax.erf(x * 0.7071067811865476))


def _layer_norm(h, gamma, beta):
    mu = jnp.mean(h, axis=-1, keepdims=True)
    var = jnp.mean((h - mu) ** 2, axis=-1, keepdims=True)   # population var, like PyTorch
    return (h - mu) * jax.lax.rsqrt(var + LN_EPS) * gamma + beta


def defense_kernel(x_ref, w1_ref, w2_ref, wm_ref, vec_ref, acts_ref):
    # x_ref:  (TB, 512) bf16   w1: (512, 256) bf16
    # w2: (256, 128) bf16      wm: (128, 128) bf16 (cols >= 7 are zero)
    # vec_ref: (8, 256) f32 packed biases / LayerNorm params
    vec = vec_ref[...]
    b1 = vec[_ROW_B1:_ROW_B1 + 1, :]
    g1 = vec[_ROW_G1:_ROW_G1 + 1, :]
    be1 = vec[_ROW_BE1:_ROW_BE1 + 1, :]
    b2 = vec[_ROW_B2:_ROW_B2 + 1, :HID2]
    g2 = vec[_ROW_G2:_ROW_G2 + 1, :HID2]
    be2 = vec[_ROW_BE2:_ROW_BE2 + 1, :HID2]
    bm = vec[_ROW_BM:_ROW_BM + 1, :OUT_PAD]

    # Linear(398->256, K zero-padded to 512) + LayerNorm(256) + GELU
    h = jnp.dot(x_ref[...], w1_ref[...], preferred_element_type=jnp.float32) + b1
    h = _gelu_exact(_layer_norm(h, g1, be1))

    # Linear(256->128) + LayerNorm(128) + GELU
    h = jnp.dot(h.astype(jnp.bfloat16), w2_ref[...],
                preferred_element_type=jnp.float32) + b2
    h = _gelu_exact(_layer_norm(h, g2, be2))

    # 7 stacked Linear(128->1) heads (padded to 128 lanes) + sigmoid
    logits = jnp.dot(h.astype(jnp.bfloat16), wm_ref[...],
                     preferred_element_type=jnp.float32) + bm
    acts_ref[...] = jax.nn.sigmoid(logits)


@functools.partial(jax.jit, static_argnames=("block_b",))
def defense_mechanisms_forward(params, emotional_input, anxiety_level, block_b=256):
    """emotional_input: (B, 398) f32, anxiety_level: scalar f32.

    Returns (activations (B, 7), gated_activations (B, 7), active bool scalar).
    """
    b = emotional_input.shape[0]
    tb, bp = _plan_tiles(b, block_b)

    # Single fused pad+cast pass: padded bf16 input (halves input HBM traffic
    # vs. the previous f32 padded buffer).
    x = jnp.zeros((bp, IN_PAD), jnp.bfloat16)
    x = x.at[:b, :IN_DIM].set(emotional_input.astype(jnp.bfloat16))

    acts_p = pl.pallas_call(
        defense_kernel,
        grid=(bp // tb,),
        in_specs=[
            pl.BlockSpec((tb, IN_PAD), lambda i: (i, 0)),
            pl.BlockSpec((IN_PAD, HID1), lambda i: (0, 0)),   # weights: constant
            pl.BlockSpec((HID1, HID2), lambda i: (0, 0)),     # index_maps keep
            pl.BlockSpec((HID2, OUT_PAD), lambda i: (0, 0)),  # them VMEM-resident
            pl.BlockSpec((8, VEC_W), lambda i: (0, 0)),
        ],
        out_specs=pl.BlockSpec((tb, OUT_PAD), lambda i: (i, 0)),
        out_shape=jax.ShapeDtypeStruct((bp, OUT_PAD), jnp.float32),
        compiler_params=pltpu.CompilerParams(
            dimension_semantics=("parallel",),
            # Headroom above v5e's 16 MiB scoped default for large batch tiles;
            # well under every generation's physical VMEM.
            vmem_limit_bytes=32 * 1024 * 1024),
    )(x, params["w1"], params["w2"], params["wm"], params["vec"])

    acts = acts_p[:b, :N_MECH]
    # Scalar anxiety gate applied on the tiny (B, 7) slice in the wrapper
    # (removed from the kernel to halve output writeback).
    active = anxiety_level > params["anxiety_threshold"]
    gated = acts * active.astype(acts.dtype)
    return acts, gated, active


def init_params(key):
    ks = jax.random.split(key, 3)

    def lin(k, fan_in, fan_out):
        bound = 1.0 / jnp.sqrt(fan_in)
        kw, kb = jax.random.split(k)
        w = jax.random.uniform(kw, (fan_in, fan_out), jnp.float32, -bound, bound)
        b = jax.random.uniform(kb, (fan_out,), jnp.float32, -bound, bound)
        return w, b

    w1, b1 = lin(ks[0], IN_DIM, HID1)
    w2, b2 = lin(ks[1], HID1, HID2)
    wm, bm = lin(ks[2], HID2, N_MECH)

    # zero-pad K (398 -> 512) and the head output dim (7 -> 128): numerically inert
    w1p = jnp.zeros((IN_PAD, HID1), jnp.float32).at[:IN_DIM, :].set(w1)
    wmp = jnp.zeros((HID2, OUT_PAD), jnp.float32).at[:, :N_MECH].set(wm)

    # pack all small per-layer vectors into one (8, 256) f32 buffer (one DMA)
    vec = jnp.zeros((8, VEC_W), jnp.float32)
    vec = vec.at[_ROW_B1, :HID1].set(b1)
    vec = vec.at[_ROW_G1, :HID1].set(1.0)   # LayerNorm(256) gamma; beta row stays 0
    vec = vec.at[_ROW_B2, :HID2].set(b2)
    vec = vec.at[_ROW_G2, :HID2].set(1.0)   # LayerNorm(128) gamma; beta row stays 0
    vec = vec.at[_ROW_BM, :N_MECH].set(bm)

    return {
        "w1": w1p.astype(jnp.bfloat16),
        "w2": w2.astype(jnp.bfloat16),
        "wm": wmp.astype(jnp.bfloat16),
        "vec": vec,
        "anxiety_threshold": jnp.float32(0.7),
    }


def _reference_forward(params, emotional_input, anxiety_level):
    """Plain-JAX reference using the identical padded bf16 weights/activations."""
    x = jnp.zeros((emotional_input.shape[0], IN_PAD), jnp.bfloat16)
    x = x.at[:, :IN_DIM].set(emotional_input.astype(jnp.bfloat16))
    vec = params["vec"]
    h = jnp.dot(x, params["w1"], preferred_element_type=jnp.float32) + vec[_ROW_B1, :]
    h = _gelu_exact(_layer_norm(h, vec[_ROW_G1, :], vec[_ROW_BE1, :]))
    h = jnp.dot(h.astype(jnp.bfloat16), params["w2"],
                preferred_element_type=jnp.float32) + vec[_ROW_B2, :HID2]
    h = _gelu_exact(_layer_norm(h, vec[_ROW_G2, :HID2], vec[_ROW_BE2, :HID2]))
    logits = jnp.dot(h.astype(jnp.bfloat16), params["wm"],
                     preferred_element_type=jnp.float32) + vec[_ROW_BM, :OUT_PAD]
    acts = jax.nn.sigmoid(logits)[:, :N_MECH]
    gated = acts * (anxiety_level > params["anxiety_threshold"]).astype(jnp.float32)
    return acts, gated


if __name__ == "__main__":
    key = jax.random.PRNGKey(0)
    pkey, xkey = jax.random.split(key)
    params = init_params(pkey)

    B = 8
    emotional_input = jax.random.normal(xkey, (B, IN_DIM), jnp.float32)
    anxiety_level = jnp.float32(0.9)                        # > threshold -> active

    acts, gated, active = jax.block_until_ready(
        defense_mechanisms_forward(params, emotional_input, anxiety_level))

    # correctness check against a plain-JAX reference with the same bf16 casts
    ref_acts, ref_gated = _reference_forward(params, emotional_input, anxiety_level)
    assert jnp.allclose(acts, ref_acts, atol=1e-2), "activation mismatch vs reference"
    assert jnp.allclose(gated, ref_gated, atol=1e-2), "gated mismatch vs reference"

    # reproduce the PyTorch module's dict output for the first request (row 0)
    # TODO(synk): the data-dependent anxiety branch / dict assembly has no Pallas
    # equivalent; it is host-side logic, as in the original module.
    if bool(active):
        idx = int(jnp.argmax(acts[0]))
        result = {
            "active_defense": MECHANISM_NAMES[idx],
            "defense_strength": float(acts[0, idx]),
            "all_mechanisms": {n: float(acts[0, i]) for i, n in enumerate(MECHANISM_NAMES)},
        }
    else:
        result = {
            "active_defense": None,
            "defense_strength": 0.0,
            "all_mechanisms": {n: 0.0 for n in MECHANISM_NAMES},
        }

    assert result["active_defense"] in MECHANISM_NAMES
    assert 0.0 <= result["defense_strength"] <= 1.0
    print("KERNEL_OK")
</pallas_src>

<mosaic_0001>
module attributes {stable_mosaic.version = 11 : i64} {
  func.func @defense_kernel(%arg0: i32, %arg1: memref<16x512xbf16, #tpu.memory_space<vmem>>, %arg2: memref<512x256xbf16, #tpu.memory_space<vmem>>, %arg3: memref<256x128xbf16, #tpu.memory_space<vmem>>, %arg4: memref<128x128xbf16, #tpu.memory_space<vmem>>, %arg5: memref<8x256xf32, #tpu.memory_space<vmem>>, %arg6: memref<16x128xf32, #tpu.memory_space<vmem>>) attributes {dimension_semantics = [#tpu.dimension_semantics<parallel>], iteration_bounds = array<i64: 1>, scalar_prefetch = 0 : i64, scratch_operands = 0 : i64, tpu.core_type = #tpu.core_type<tc>, window_params = [{transform_indices = @transform_0, window_bounds = array<i64: 16, 512>}, {pipeline_mode = #tpu.pipeline_mode<synchronous>, transform_indices = @transform_1, window_bounds = array<i64: 512, 256>}, {pipeline_mode = #tpu.pipeline_mode<synchronous>, transform_indices = @transform_2, window_bounds = array<i64: 256, 128>}, {pipeline_mode = #tpu.pipeline_mode<synchronous>, transform_indices = @transform_3, window_bounds = array<i64: 128, 128>}, {pipeline_mode = #tpu.pipeline_mode<synchronous>, transform_indices = @transform_4, window_bounds = array<i64: 8, 256>}, {transform_indices = @transform_5, window_bounds = array<i64: 16, 128>}]} {
    %c0 = arith.constant 0 : index
    %c0_0 = arith.constant 0 : index
    %0 = vector.load %arg5[%c0, %c0_0] : memref<8x256xf32, #tpu.memory_space<vmem>>, vector<8x256xf32>
    %1 = vector.extract_strided_slice %0 {offsets = [0, 0], sizes = [1, 256], strides = [1, 1]} : vector<8x256xf32> to vector<1x256xf32>
    %2 = vector.extract_strided_slice %0 {offsets = [1, 0], sizes = [1, 256], strides = [1, 1]} : vector<8x256xf32> to vector<1x256xf32>
    %3 = vector.extract_strided_slice %0 {offsets = [2, 0], sizes = [1, 256], strides = [1, 1]} : vector<8x256xf32> to vector<1x256xf32>
    %4 = vector.extract_strided_slice %0 {offsets = [3, 0], sizes = [1, 128], strides = [1, 1]} : vector<8x256xf32> to vector<1x128xf32>
    %5 = vector.extract_strided_slice %0 {offsets = [4, 0], sizes = [1, 128], strides = [1, 1]} : vector<8x256xf32> to vector<1x128xf32>
    %6 = vector.extract_strided_slice %0 {offsets = [5, 0], sizes = [1, 128], strides = [1, 1]} : vector<8x256xf32> to vector<1x128xf32>
    %7 = vector.extract_strided_slice %0 {offsets = [6, 0], sizes = [1, 128], strides = [1, 1]} : vector<8x256xf32> to vector<1x128xf32>
    %c0_1 = arith.constant 0 : index
    %c0_2 = arith.constant 0 : index
    %8 = vector.load %arg1[%c0_1, %c0_2] : memref<16x512xbf16, #tpu.memory_space<vmem>>, vector<16x512xbf16>
    %c0_3 = arith.constant 0 : index
    %c0_4 = arith.constant 0 : index
    %9 = vector.load %arg2[%c0_3, %c0_4] : memref<512x256xbf16, #tpu.memory_space<vmem>>, vector<512x256xbf16>
    %cst = arith.constant dense<0.000000e+00> : vector<16x256xf32>
    %10 = tpu.matmul %8, %9, %cst {dimension_numbers = #tpu.dot_dimension_numbers<[1], [0], [0], [1], [0, 0, 1, 1], [], []>} : vector<16x512xbf16>, vector<512x256xbf16>, vector<16x256xf32> -> vector<16x256xf32>
    %11 = vector.broadcast %1 : vector<1x256xf32> to vector<16x256xf32>
    %12 = arith.addf %10, %11 : vector<16x256xf32>
    %cst_5 = arith.constant dense<0.000000e+00> : vector<16xf32>
    %13 = vector.multi_reduction <add>, %12, %cst_5 [1] : vector<16x256xf32> to vector<16xf32>
    %14 = vector.shape_cast %13 : vector<16xf32> to vector<16x1xf32>
    %cst_6 = arith.constant 2.560000e+02 : f32
    %15 = vector.broadcast %cst_6 : f32 to vector<16x1xf32>
    %16 = arith.divf %14, %15 : vector<16x1xf32>
    %17 = vector.broadcast %16 : vector<16x1xf32> to vector<16x256xf32>
    %18 = arith.subf %12, %17 : vector<16x256xf32>
    %19 = arith.mulf %18, %18 : vector<16x256xf32>
    %cst_7 = arith.constant dense<0.000000e+00> : vector<16xf32>
    %20 = vector.multi_reduction <add>, %19, %cst_7 [1] : vector<16x256xf32> to vector<16xf32>
    %21 = vector.shape_cast %20 : vector<16xf32> to vector<16x1xf32>
    %cst_8 = arith.constant 2.560000e+02 : f32
    %22 = vector.broadcast %cst_8 : f32 to vector<16x1xf32>
    %23 = arith.divf %21, %22 : vector<16x1xf32>
    %24 = vector.broadcast %16 : vector<16x1xf32> to vector<16x256xf32>
    %25 = arith.subf %12, %24 : vector<16x256xf32>
    %cst_9 = arith.constant 9.99999974E-6 : f32
    %26 = vector.broadcast %cst_9 : f32 to vector<16x1xf32>
    %27 = arith.addf %23, %26 : vector<16x1xf32>
    %28 = math.rsqrt %27 : vector<16x1xf32>
    %29 = vector.broadcast %28 : vector<16x1xf32> to vector<16x256xf32>
    %30 = arith.mulf %25, %29 : vector<16x256xf32>
    %31 = vector.broadcast %2 : vector<1x256xf32> to vector<16x256xf32>
    %32 = arith.mulf %30, %31 : vector<16x256xf32>
    %33 = vector.broadcast %3 : vector<1x256xf32> to vector<16x256xf32>
    %34 = arith.addf %32, %33 : vector<16x256xf32>
    %cst_10 = arith.constant 5.000000e-01 : f32
    %35 = vector.broadcast %cst_10 : f32 to vector<16x256xf32>
    %36 = arith.mulf %35, %34 : vector<16x256xf32>
    %cst_11 = arith.constant 0.707106769 : f32
    %37 = vector.broadcast %cst_11 : f32 to vector<16x256xf32>
    %38 = arith.mulf %34, %37 : vector<16x256xf32>
    %39 = math.erf %38 : vector<16x256xf32>
    %cst_12 = arith.constant 1.000000e+00 : f32
    %40 = vector.broadcast %cst_12 : f32 to vector<16x256xf32>
    %41 = arith.addf %40, %39 : vector<16x256xf32>
    %42 = arith.mulf %36, %41 : vector<16x256xf32>
    %43 = arith.truncf %42 : vector<16x256xf32> to vector<16x256xbf16>
    %c0_13 = arith.constant 0 : index
    %c0_14 = arith.constant 0 : index
    %44 = vector.load %arg3[%c0_13, %c0_14] : memref<256x128xbf16, #tpu.memory_space<vmem>>, vector<256x128xbf16>
    %cst_15 = arith.constant dense<0.000000e+00> : vector<16x128xf32>
    %45 = tpu.matmul %43, %44, %cst_15 {dimension_numbers = #tpu.dot_dimension_numbers<[1], [0], [0], [1], [0, 0, 1, 1], [], []>} : vector<16x256xbf16>, vector<256x128xbf16>, vector<16x128xf32> -> vector<16x128xf32>
    %46 = vector.broadcast %4 : vector<1x128xf32> to vector<16x128xf32>
    %47 = arith.addf %45, %46 : vector<16x128xf32>
    %cst_16 = arith.constant dense<0.000000e+00> : vector<16xf32>
    %48 = vector.multi_reduction <add>, %47, %cst_16 [1] : vector<16x128xf32> to vector<16xf32>
    %49 = vector.shape_cast %48 : vector<16xf32> to vector<16x1xf32>
    %cst_17 = arith.constant 1.280000e+02 : f32
    %50 = vector.broadcast %cst_17 : f32 to vector<16x1xf32>
    %51 = arith.divf %49, %50 : vector<16x1xf32>
    %52 = vector.broadcast %51 : vector<16x1xf32> to vector<16x128xf32>
    %53 = arith.subf %47, %52 : vector<16x128xf32>
    %54 = arith.mulf %53, %53 : vector<16x128xf32>
    %cst_18 = arith.constant dense<0.000000e+00> : vector<16xf32>
    %55 = vector.multi_reduction <add>, %54, %cst_18 [1] : vector<16x128xf32> to vector<16xf32>
    %56 = vector.shape_cast %55 : vector<16xf32> to vector<16x1xf32>
    %cst_19 = arith.constant 1.280000e+02 : f32
    %57 = vector.broadcast %cst_19 : f32 to vector<16x1xf32>
    %58 = arith.divf %56, %57 : vector<16x1xf32>
    %59 = vector.broadcast %51 : vector<16x1xf32> to vector<16x128xf32>
    %60 = arith.subf %47, %59 : vector<16x128xf32>
    %cst_20 = arith.constant 9.99999974E-6 : f32
    %61 = vector.broadcast %cst_20 : f32 to vector<16x1xf32>
    %62 = arith.addf %58, %61 : vector<16x1xf32>
    %63 = math.rsqrt %62 : vector<16x1xf32>
    %64 = vector.broadcast %63 : vector<16x1xf32> to vector<16x128xf32>
    %65 = arith.mulf %60, %64 : vector<16x128xf32>
    %66 = vector.broadcast %5 : vector<1x128xf32> to vector<16x128xf32>
    %67 = arith.mulf %65, %66 : vector<16x128xf32>
    %68 = vector.broadcast %6 : vector<1x128xf32> to vector<16x128xf32>
    %69 = arith.addf %67, %68 : vector<16x128xf32>
    %cst_21 = arith.constant 5.000000e-01 : f32
    %70 = vector.broadcast %cst_21 : f32 to vector<16x128xf32>
    %71 = arith.mulf %70, %69 : vector<16x128xf32>
    %cst_22 = arith.constant 0.707106769 : f32
    %72 = vector.broadcast %cst_22 : f32 to vector<16x128xf32>
    %73 = arith.mulf %69, %72 : vector<16x128xf32>
    %74 = math.erf %73 : vector<16x128xf32>
    %cst_23 = arith.constant 1.000000e+00 : f32
    %75 = vector.broadcast %cst_23 : f32 to vector<16x128xf32>
    %76 = arith.addf %75, %74 : vector<16x128xf32>
    %77 = arith.mulf %71, %76 : vector<16x128xf32>
    %78 = arith.truncf %77 : vector<16x128xf32> to vector<16x128xbf16>
    %c0_24 = arith.constant 0 : index
    %c0_25 = arith.constant 0 : index
    %79 = vector.load %arg4[%c0_24, %c0_25] : memref<128x128xbf16, #tpu.memory_space<vmem>>, vector<128x128xbf16>
    %cst_26 = arith.constant dense<0.000000e+00> : vector<16x128xf32>
    %80 = tpu.matmul %78, %79, %cst_26 {dimension_numbers = #tpu.dot_dimension_numbers<[1], [0], [0], [1], [0, 0, 1, 1], [], []>} : vector<16x128xbf16>, vector<128x128xbf16>, vector<16x128xf32> -> vector<16x128xf32>
    %81 = vector.broadcast %7 : vector<1x128xf32> to vector<16x128xf32>
    %82 = arith.addf %80, %81 : vector<16x128xf32>
    %83 = arith.negf %82 : vector<16x128xf32>
    %84 = math.exp %83 : vector<16x128xf32>
    %cst_27 = arith.constant 1.000000e+00 : f32
    %85 = vector.broadcast %cst_27 : f32 to vector<16x128xf32>
    %86 = arith.addf %85, %84 : vector<16x128xf32>
    %87 = arith.divf %85, %86 : vector<16x128xf32>
    %c0_28 = arith.constant 0 : index
    %c0_29 = arith.constant 0 : index
    %88 = vector.load %arg6[%c0_28, %c0_29] : memref<16x128xf32, #tpu.memory_space<vmem>>, vector<16x128xf32>
    tpu.vector_store %arg6[%c0_28, %c0_29], %87 {strides = array<i32>} : memref<16x128xf32, #tpu.memory_space<vmem>>, vector<16x128xf32>,
    return
  }
  func.func @transform_0(%arg0: i32) -> (i32, i32) {
    %c0_i32 = arith.constant 0 : i32
    %c0_i32_0 = arith.constant 0 : i32
    return %arg0, %c0_i32 : i32, i32
  }
  func.func @transform_1(%arg0: i32) -> (i32, i32) {
    %c0_i32 = arith.constant 0 : i32
    %c0_i32_0 = arith.constant 0 : i32
    %c0_i32_1 = arith.constant 0 : i32
    return %c0_i32, %c0_i32_0 : i32, i32
  }
  func.func @transform_2(%arg0: i32) -> (i32, i32) {
    %c0_i32 = arith.constant 0 : i32
    %c0_i32_0 = arith.constant 0 : i32
    %c0_i32_1 = arith.constant 0 : i32
    return %c0_i32, %c0_i32_0 : i32, i32
  }
  func.func @transform_3(%arg0: i32) -> (i32, i32) {
    %c0_i32 = arith.constant 0 : i32
    %c0_i32_0 = arith.constant 0 : i32
    %c0_i32_1 = arith.constant 0 : i32
    return %c0_i32, %c0_i32_0 : i32, i32
  }
  func.func @transform_4(%arg0: i32) -> (i32, i32) {
    %c0_i32 = arith.constant 0 : i32
    %c0_i32_0 = arith.constant 0 : i32
    %c0_i32_1 = arith.constant 0 : i32
    return %c0_i32, %c0_i32_0 : i32, i32
  }
  func.func @transform_5(%arg0: i32) -> (i32, i32) {
    %c0_i32 = arith.constant 0 : i32
    %c0_i32_0 = arith.constant 0 : i32
    return %arg0, %c0_i32 : i32, i32
  }
}

</mosaic_0001>

<llo_original>
// kernel: defense_mechanisms_forward.1
$region0: #{defense_mechanisms_forward.1}
  #allocation0 [shape = 'u32[]', space=smem, size = 0x4, offset = 0x4, fixed_abs, tag = 'smem constant byte address 0x4 - core index']
  #allocation1 [shape = 'u32[144,128]{1,0:T(1,128)}', space=vmem, size = 0x12000, scoped, tag = 'internal scratch']
  %s0 = inlined_call_operand.vmem [shape: bf16[16,512], index: 0, kind: input, shape index: {}]
  %s1 = inlined_call_operand.hbm [shape: bf16[512,256], index: 1, kind: input, shape index: {}]
  %s2 = inlined_call_operand.hbm [shape: bf16[256,128], index: 2, kind: input, shape index: {}]
  %s3 = inlined_call_operand.vmem [shape: bf16[128,128], index: 3, kind: input, shape index: {}]
  %s4 = inlined_call_operand.vmem [shape: f32[8,256], index: 4, kind: input, shape index: {}]
  %s5 = inlined_call_operand.vmem [shape: f32[16,128], index: 5, kind: output, shape index: {}]
  %s6 = sld [smem:[#allocation0]]
  $region38: #{defense_mechanisms_forward.1} parent=0
    _
  %s8 = ssub.s32 1, %s6
  %s9 = scalar_select 0, %s8, %s6
  $region1: #{defense_mechanisms_forward.1} parent=0
    #allocation2 [shape = 'u8[262144]{0}', space=vmem, size = 0x40000, scoped, tag = 'input window, operand 1, single buffered']
    #allocation3 [shape = 's32[1]{0}', space=sflag, size = 0x4, scoped, tag = 'scoped memory for defense_mechanisms_forward.1']
    #allocation4 [shape = 'u8[65536]{0}', space=vmem, size = 0x10000, scoped, tag = 'input window, operand 2, single buffered']
    #allocation5 [shape = 's32[1]{0}', space=sflag, size = 0x4, scoped, tag = 'scoped memory for defense_mechanisms_forward.1']
    %10 = vsyncpa [#allocation3], 0
    %11 = vsyncpa [#allocation5], 0
    // Predicated region
    $region2: #{defense_mechanisms_forward.1} parent=1 // pred_check
      _
    $region3: #{defense_mechanisms_forward.1} parent=1 // pred_check_branch
      %13 = sbr.rel (0) target = $region5
    $region4: #{defense_mechanisms_forward.1} parent=1 // pred_region
      _
    $region5: #{defense_mechanisms_forward.1} parent=1 // pred_fallthru
      _
    // Predicated region
    $region6: #{defense_mechanisms_forward.1} parent=1 // pred_check
      _
    $region7: #{defense_mechanisms_forward.1} parent=1 // pred_check_branch
      %15 = sbr.rel (0) target = $region9
    $region8: #{defense_mechanisms_forward.1} parent=1 // pred_region
      %s17 = ssub.s32 8192, 8192
      %18 = vsyncadd [#allocation3], %s17
      %s19 = sshll.u32 [#allocation2], 4
      %s20 = int_to_ptr.vmem [resolvable:$true] %s19
      %25 = dma.hbm_to_vmem [thread:$0]  %s1, 8192, %s20, [#allocation3], 128, 128, 8
    $region9: #{defense_mechanisms_forward.1} parent=1 // pred_fallthru
      _
    // Predicated region
    $region10: #{defense_mechanisms_forward.1} parent=1 // pred_check
      _
    $region11: #{defense_mechanisms_forward.1} parent=1 // pred_check_branch
      %27 = sbr.rel (0) target = $region13
    $region12: #{defense_mechanisms_forward.1} parent=1 // pred_region
      %s29 = ssub.s32 2048, 2048
      %30 = vsyncadd [#allocation5], %s29
      %s31 = sshll.u32 [#allocation4], 4
      %s32 = int_to_ptr.vmem [resolvable:$true] %s31
      %37 = dma.hbm_to_vmem [thread:$0]  %s2, 2048, %s32, [#allocation5], 64, 64, 4
    $region13: #{defense_mechanisms_forward.1} parent=1 // pred_fallthru
      _
    // Predicated region
    $region14: #{defense_mechanisms_forward.1} parent=1 // pred_check
      _
    $region15: #{defense_mechanisms_forward.1} parent=1 // pred_check_branch
      %39 = sbr.rel (0) target = $region17
    $region16: #{defense_mechanisms_forward.1} parent=1 // pred_region
      _
    $region17: #{defense_mechanisms_forward.1} parent=1 // pred_fallthru
      _
    // Predicated region
    $region18: #{defense_mechanisms_forward.1} parent=1 // pred_check
      _
    $region19: #{defense_mechanisms_forward.1} parent=1 // pred_check_branch
      %41 = sbr.rel (0) target = $region21
    $region20: #{defense_mechanisms_forward.1} parent=1 // pred_region
      _
    $region21: #{defense_mechanisms_forward.1} parent=1 // pred_fallthru
      _
    // Predicated region
    $region22: #{defense_mechanisms_forward.1} parent=1 // pred_check
      _
    $region23: #{defense_mechanisms_forward.1} parent=1 // pred_check_branch
      %43 = sbr.rel (0) target = $region25
    $region24: #{defense_mechanisms_forward.1} parent=1 // pred_region
      %44 = dma.done [#allocation3], 8192
    $region25: #{defense_mechanisms_forward.1} parent=1 // pred_fallthru
      _
    // Predicated region
    $region26: #{defense_mechanisms_forward.1} parent=1 // pred_check
      _
    $region27: #{defense_mechanisms_forward.1} parent=1 // pred_check_branch
      %46 = sbr.rel (0) target = $region29
    $region28: #{defense_mechanisms_forward.1} parent=1 // pred_region
      %47 = dma.done [#allocation5], 2048
    $region29: #{defense_mechanisms_forward.1} parent=1 // pred_fallthru
      _
    %v49 = vld [vmem:[%s4] sm:$0xff]
    %v50 = vld [vmem:[%s4 + $0x8] sm:$0xff]
    %v51 = vld [vmem:[%s0] sm:$0xff]
    %v52 = vld [vmem:[%s0 + $0x8] sm:$0xff]
    %v53 = vld [vmem:[%s0 + $0x10] sm:$0xff]
    %v54 = vld [vmem:[%s0 + $0x18] sm:$0xff]
    %v55 = vld [vmem:[#allocation2] sm:$0xff]
    %v56 = vld [vmem:[#allocation2 + $0x8] sm:$0xff]
    %v57 = vld [vmem:[#allocation2 + $0x10] sm:$0xff]
    %v58 = vld [vmem:[#allocation2 + $0x18] sm:$0xff]
    %v59 = vld [vmem:[#allocation2 + $0x20] sm:$0xff]
    %v60 = vld [vmem:[#allocation2 + $0x28] sm:$0xff]
    %v61 = vld [vmem:[#allocation2 + $0x30] sm:$0xff]
    %v62 = vld [vmem:[#allocation2 + $0x38] sm:$0xff]
    %v63 = vld [vmem:[#allocation2 + $0x40] sm:$0xff]
    %v64 = vld [vmem:[#allocation2 + $0x48] sm:$0xff]
    %v65 = vld [vmem:[#allocation2 + $0x50] sm:$0xff]
    %v66 = vld [vmem:[#allocation2 + $0x58] sm:$0xff]
    %v67 = vld [vmem:[#allocation2 + $0x60] sm:$0xff]
    %v68 = vld [vmem:[#allocation2 + $0x68] sm:$0xff]
    %v69 = vld [vmem:[#allocation2 + $0x70] sm:$0xff]
    %v70 = vld [vmem:[#allocation2 + $0x78] sm:$0xff]
    %v71 = vld [vmem:[#allocation2 + $0x80] sm:$0xff]
    %v72 = vld [vmem:[#allocation2 + $0x88] sm:$0xff]
    %v73 = vld [vmem:[#allocation2 + $0x90] sm:$0xff]
    %v74 = vld [vmem:[#allocation2 + $0x98] sm:$0xff]
    %v75 = vld [vmem:[#allocation2 + $0xa0] sm:$0xff]
    %v76 = vld [vmem:[#allocation2 + $0xa8] sm:$0xff]
    %v77 = vld [vmem:[#allocation2 + $0xb0] sm:$0xff]
    %v78 = vld [vmem:[#allocation2 + $0xb8] sm:$0xff]
    %v79 = vld [vmem:[#allocation2 + $0xc0] sm:$0xff]
    %v80 = vld [vmem:[#allocation2 + $0xc8] sm:$0xff]
    %v81 = vld [vmem:[#allocation2 + $0xd0] sm:$0xff]
    %v82 = vld [vmem:[#allocation2 + $0xd8] sm:$0xff]
    %v83 = vld [vmem:[#allocation2 + $0xe0] sm:$0xff]
    %v84 = vld [vmem:[#allocation2 + $0xe8] sm:$0xff]
    %v85 = vld [vmem:[#allocation2 + $0xf0] sm:$0xff]
    %v86 = vld [vmem:[#allocation2 + $0xf8] sm:$0xff]
    %v87 = vld [vmem:[#allocation2 + $0x100] sm:$0xff]
    %v88 = vld [vmem:[#allocation2 + $0x108] sm:$0xff]
    %v89 = vld [vmem:[#allocation2 + $0x110] sm:$0xff]
    %v90 = vld [vmem:[#allocation2 + $0x118] sm:$0xff]
    %v91 = vld [vmem:[#allocation2 + $0x120] sm:$0xff]
    %v92 = vld [vmem:[#allocation2 + $0x128] sm:$0xff]
    %v93 = vld [vmem:[#allocation2 + $0x130] sm:$0xff]
    %v94 = vld [vmem:[#allocation2 + $0x138] sm:$0xff]
    %v95 = vld [vmem:[#allocation2 + $0x140] sm:$0xff]
    %v96 = vld [vmem:[#allocation2 + $0x148] sm:$0xff]
    %v97 = vld [vmem:[#allocation2 + $0x150] sm:$0xff]
    %v98 = vld [vmem:[#allocation2 + $0x158] sm:$0xff]
    %v99 = vld [vmem:[#allocation2 + $0x160] sm:$0xff]
    %v100 = vld [vmem:[#allocation2 + $0x168] sm:$0xff]
    %v101 = vld [vmem:[#allocation2 + $0x170] sm:$0xff]
    %v102 = vld [vmem:[#allocation2 + $0x178] sm:$0xff]
    %v103 = vld [vmem:[#allocation2 + $0x180] sm:$0xff]
    %v104 = vld [vmem:[#allocation2 + $0x188] sm:$0xff]
    %v105 = vld [vmem:[#allocation2 + $0x190] sm:$0xff]
    %v106 = vld [vmem:[#allocation2 + $0x198] sm:$0xff]
    %v107 = vld [vmem:[#allocation2 + $0x1a0] sm:$0xff]
    %v108 = vld [vmem:[#allocation2 + $0x1a8] sm:$0xff]
    %v109 = vld [vmem:[#allocation2 + $0x1b0] sm:$0xff]
    %v110 = vld [vmem:[#allocation2 + $0x1b8] sm:$0xff]
    %v111 = vld [vmem:[#allocation2 + $0x1c0] sm:$0xff]
    %v112 = vld [vmem:[#allocation2 + $0x1c8] sm:$0xff]
    %v113 = vld [vmem:[#allocation2 + $0x1d0] sm:$0xff]
    %v114 = vld [vmem:[#allocation2 + $0x1d8] sm:$0xff]
    %v115 = vld [vmem:[#allocation2 + $0x1e0] sm:$0xff]
    %v116 = vld [vmem:[#allocation2 + $0x1e8] sm:$0xff]
    %v117 = vld [vmem:[#allocation2 + $0x1f0] sm:$0xff]
    %v118 = vld [vmem:[#allocation2 + $0x1f8] sm:$0xff]
    %v119 = vlaneseq
    %v120 = vshrl.u32 %v119, 7
    %v121 = vsub.s32 0, %v120
    %v122 = vrot.slane %v49, %v121
    %v123 = vlaneseq
    %v124 = vshrl.u32 %v123, 7
    %v125 = vsub.s32 0, %v124
    %v126 = vrot.slane %v50, %v125
    %v131 = vunpack.c.l.b16 %v51
    %v132 = vunpack.c.h.b16 %v51
    %v133 = vunpack.c.l.b16 %v52
    %v134 = vunpack.c.h.b16 %v52
    %v135 = vunpack.c.l.b16 %v53
    %v136 = vunpack.c.h.b16 %v53
    %v137 = vunpack.c.l.b16 %v54
    %v138 = vunpack.c.h.b16 %v54
    %v139 = vpack.c.b16 %v135, %v131
    %v140 = vpack.c.b16 %v136, %v132
    %v141 = vpack.c.b16 %v137, %v133
    %v142 = vpack.c.b16 %v138, %v134
    %v211 = vunpack.c.l.b16 %v55
    %v212 = vunpack.c.h.b16 %v55
    %v213 = vunpack.c.l.b16 %v56
    %v214 = vunpack.c.h.b16 %v56
    %v215 = vunpack.c.l.b16 %v57
    %v216 = vunpack.c.h.b16 %v57
    %v217 = vunpack.c.l.b16 %v58
    %v218 = vunpack.c.h.b16 %v58
    %v219 = vunpack.c.l.b16 %v59
    %v220 = vunpack.c.h.b16 %v59
    %v221 = vunpack.c.l.b16 %v60
    %v222 = vunpack.c.h.b16 %v60
    %v223 = vunpack.c.l.b16 %v61
    %v224 = vunpack.c.h.b16 %v61
    %v225 = vunpack.c.l.b16 %v62
    %v226 = vunpack.c.h.b16 %v62
    %v227 = vunpack.c.l.b16 %v63
    %v228 = vunpack.c.h.b16 %v63
    %v229 = vunpack.c.l.b16 %v64
    %v230 = vunpack.c.h.b16 %v64
    %v231 = vunpack.c.l.b16 %v65
    %v232 = vunpack.c.h.b16 %v65
    %v233 = vunpack.c.l.b16 %v66
    %v234 = vunpack.c.h.b16 %v66
    %v235 = vunpack.c.l.b16 %v67
    %v236 = vunpack.c.h.b16 %v67
    %v237 = vunpack.c.l.b16 %v68
    %v238 = vunpack.c.h.b16 %v68
    %v239 = vunpack.c.l.b16 %v69
    %v240 = vunpack.c.h.b16 %v69
    %v241 = vunpack.c.l.b16 %v70
    %v242 = vunpack.c.h.b16 %v70
    %v243 = vunpack.c.l.b16 %v71
    %v244 = vunpack.c.h.b16 %v71
    %v245 = vunpack.c.l.b16 %v72
    %v246 = vunpack.c.h.b16 %v72
    %v247 = vunpack.c.l.b16 %v73
    %v248 = vunpack.c.h.b16 %v73
    %v249 = vunpack.c.l.b16 %v74
    %v250 = vunpack.c.h.b16 %v74
    %v251 = vunpack.c.l.b16 %v75
    %v252 = vunpack.c.h.b16 %v75
    %v253 = vunpack.c.l.b16 %v76
    %v254 = vunpack.c.h.b16 %v76
    %v255 = vunpack.c.l.b16 %v77
    %v256 = vunpack.c.h.b16 %v77
    %v257 = vunpack.c.l.b16 %v78
    %v258 = vunpack.c.h.b16 %v78
    %v259 = vunpack.c.l.b16 %v79
    %v260 = vunpack.c.h.b16 %v79
    %v261 = vunpack.c.l.b16 %v80
    %v262 = vunpack.c.h.b16 %v80
    %v263 = vunpack.c.l.b16 %v81
    %v264 = vunpack.c.h.b16 %v81
    %v265 = vunpack.c.l.b16 %v82
    %v266 = vunpack.c.h.b16 %v82
    %v267 = vunpack.c.l.b16 %v83
    %v268 = vunpack.c.h.b16 %v83
    %v269 = vunpack.c.l.b16 %v84
    %v270 = vunpack.c.h.b16 %v84
    %v271 = vunpack.c.l.b16 %v85
    %v272 = vunpack.c.h.b16 %v85
    %v273 = vunpack.c.l.b16 %v86
    %v274 = vunpack.c.h.b16 %v86
    %v275 = vunpack.c.l.b16 %v87
    %v276 = vunpack.c.h.b16 %v87
    %v277 = vunpack.c.l.b16 %v88
    %v278 = vunpack.c.h.b16 %v88
    %v279 = vunpack.c.l.b16 %v89
    %v280 = vunpack.c.h.b16 %v89
    %v281 = vunpack.c.l.b16 %v90
    %v282 = vunpack.c.h.b16 %v90
    %v283 = vunpack.c.l.b16 %v91
    %v284 = vunpack.c.h.b16 %v91
    %v285 = vunpack.c.l.b16 %v92
    %v286 = vunpack.c.h.b16 %v92
    %v287 = vunpack.c.l.b16 %v93
    %v288 = vunpack.c.h.b16 %v93
    %v289 = vunpack.c.l.b16 %v94
    %v290 = vunpack.c.h.b16 %v94
    %v291 = vunpack.c.l.b16 %v95
    %v292 = vunpack.c.h.b16 %v95
    %v293 = vunpack.c.l.b16 %v96
    %v294 = vunpack.c.h.b16 %v96
    %v295 = vunpack.c.l.b16 %v97
    %v296 = vunpack.c.h.b16 %v97
    %v297 = vunpack.c.l.b16 %v98
    %v298 = vunpack.c.h.b16 %v98
    %v299 = vunpack.c.l.b16 %v99
    %v300 = vunpack.c.h.b16 %v99
    %v301 = vunpack.c.l.b16 %v100
    %v302 = vunpack.c.h.b16 %v100
    %v303 = vunpack.c.l.b16 %v101
    %v304 = vunpack.c.h.b16 %v101
    %v305 = vunpack.c.l.b16 %v102
    %v306 = vunpack.c.h.b16 %v102
    %v307 = vunpack.c.l.b16 %v103
    %v308 = vunpack.c.h.b16 %v103
    %v309 = vunpack.c.l.b16 %v104
    %v310 = vunpack.c.h.b16 %v104
    %v311 = vunpack.c.l.b16 %v105
    %v312 = vunpack.c.h.b16 %v105
    %v313 = vunpack.c.l.b16 %v106
    %v314 = vunpack.c.h.b16 %v106
    %v315 = vunpack.c.l.b16 %v107
    %v316 = vunpack.c.h.b16 %v107
    %v317 = vunpack.c.l.b16 %v108
    %v318 = vunpack.c.h.b16 %v108
    %v319 = vunpack.c.l.b16 %v109
    %v320 = vunpack.c.h.b16 %v109
    %v321 = vunpack.c.l.b16 %v110
    %v322 = vunpack.c.h.b16 %v110
    %v323 = vunpack.c.l.b16 %v111
    %v324 = vunpack.c.h.b16 %v111
    %v325 = vunpack.c.l.b16 %v112
    %v326 = vunpack.c.h.b16 %v112
    %v327 = vunpack.c.l.b16 %v113
    %v328 = vunpack.c.h.b16 %v113
    %v329 = vunpack.c.l.b16 %v114
    %v330 = vunpack.c.h.b16 %v114
    %v331 = vunpack.c.l.b16 %v115
    %v332 = vunpack.c.h.b16 %v115
    %v333 = vunpack.c.l.b16 %v116
    %v334 = vunpack.c.h.b16 %v116
    %v335 = vunpack.c.l.b16 %v117
    %v336 = vunpack.c.h.b16 %v117
    %v337 = vunpack.c.l.b16 %v118
    %v338 = vunpack.c.h.b16 %v118
    %v339 = vpack.c.b16 %v213, %v211
    %v340 = vpack.c.b16 %v214, %v212
    %v341 = vpack.c.b16 %v217, %v215
    %v342 = vpack.c.b16 %v218, %v216
    %v343 = vpack.c.b16 %v221, %v219
    %v344 = vpack.c.b16 %v222, %v220
    %v345 = vpack.c.b16 %v225, %v223
    %v346 = vpack.c.b16 %v226, %v224
    %v347 = vpack.c.b16 %v229, %v227
    %v348 = vpack.c.b16 %v230, %v228
    %v349 = vpack.c.b16 %v233, %v231
    %v350 = vpack.c.b16 %v234, %v232
    %v351 = vpack.c.b16 %v237, %v235
    %v352 = vpack.c.b16 %v238, %v236
    %v353 = vpack.c.b16 %v241, %v239
    %v354 = vpack.c.b16 %v242, %v240
    %v355 = vpack.c.b16 %v245, %v243
    %v356 = vpack.c.b16 %v246, %v244
    %v357 = vpack.c.b16 %v249, %v247
    %v358 = vpack.c.b16 %v250, %v248
    %v359 = vpack.c.b16 %v253, %v251
    %v360 = vpack.c.b16 %v254, %v252
    %v361 = vpack.c.b16 %v257, %v255
    %v362 = vpack.c.b16 %v258, %v256
    %v363 = vpack.c.b16 %v261, %v259
    %v364 = vpack.c.b16 %v262, %v260
    %v365 = vpack.c.b16 %v265, %v263
    %v366 = vpack.c.b16 %v266, %v264
    %v367 = vpack.c.b16 %v269, %v267
    %v368 = vpack.c.b16 %v270, %v268
    %v369 = vpack.c.b16 %v273, %v271
    %v370 = vpack.c.b16 %v274, %v272
    %v371 = vpack.c.b16 %v277, %v275
    %v372 = vpack.c.b16 %v278, %v276
    %v373 = vpack.c.b16 %v281, %v279
    %v374 = vpack.c.b16 %v282, %v280
    %v375 = vpack.c.b16 %v285, %v283
    %v376 = vpack.c.b16 %v286, %v284
    %v377 = vpack.c.b16 %v289, %v287
    %v378 = vpack.c.b16 %v290, %v288
    %v379 = vpack.c.b16 %v293, %v291
    %v380 = vpack.c.b16 %v294, %v292
    %v381 = vpack.c.b16 %v297, %v295
    %v382 = vpack.c.b16 %v298, %v296
    %v383 = vpack.c.b16 %v301, %v299
    %v384 = vpack.c.b16 %v302, %v300
    %v385 = vpack.c.b16 %v305, %v303
    %v386 = vpack.c.b16 %v306, %v304
    %v387 = vpack.c.b16 %v309, %v307
    %v388 = vpack.c.b16 %v310, %v308
    %v389 = vpack.c.b16 %v313, %v311
    %v390 = vpack.c.b16 %v314, %v312
    %v391 = vpack.c.b16 %v317, %v315
    %v392 = vpack.c.b16 %v318, %v316
    %v393 = vpack.c.b16 %v321, %v319
    %v394 = vpack.c.b16 %v322, %v320
    %v395 = vpack.c.b16 %v325, %v323
    %v396 = vpack.c.b16 %v326, %v324
    %v397 = vpack.c.b16 %v329, %v327
    %v398 = vpack.c.b16 %v330, %v328
    %v399 = vpack.c.b16 %v333, %v331
    %v400 = vpack.c.b16 %v334, %v332
    %v401 = vpack.c.b16 %v337, %v335
    %v402 = vpack.c.b16 %v338, %v336
    %467 = vmatprep.subr.bf16.mxu0 %v340
    %468 = vmatpush1.bf16.msra.mxu0 %v339
    %469 = vmatprep.subr.bf16.mxu0 %v342
    %470 = vmatpush1.bf16.msra.mxu0 %v341
    %471 = vmatprep.subr.bf16.mxu0 %v344
    %472 = vmatpush1.bf16.msra.mxu0 %v343
    %473 = vmatprep.subr.bf16.mxu0 %v346
    %474 = vmatpush1.bf16.msra.mxu0 %v345
    %475 = vmatprep.subr.bf16.mxu0 %v348
    %476 = vmatpush1.bf16.msra.mxu0 %v347
    %477 = vmatprep.subr.bf16.mxu0 %v350
    %478 = vmatpush1.bf16.msra.mxu0 %v349
    %479 = vmatprep.subr.bf16.mxu0 %v352
    %480 = vmatpush1.bf16.msra.mxu0 %v351
    %481 = vmatprep.subr.bf16.mxu0 %v354
    %482 = vmatpush1.bf16.msra.mxu0 %v353
    %483 = vmatprep.subr.bf16.mxu0 %v356
    %484 = vmatpush1.bf16.msra.mxu0 %v355
    %485 = vmatprep.subr.bf16.mxu0 %v358
    %486 = vmatpush1.bf16.msra.mxu0 %v357
    %487 = vmatprep.subr.bf16.mxu0 %v360
    %488 = vmatpush1.bf16.msra.mxu0 %v359
    %489 = vmatprep.subr.bf16.mxu0 %v362
    %490 = vmatpush1.bf16.msra.mxu0 %v361
    %491 = vmatprep.subr.bf16.mxu0 %v364
    %492 = vmatpush1.bf16.msra.mxu0 %v363
    %493 = vmatprep.subr.bf16.mxu0 %v366
    %494 = vmatpush1.bf16.msra.mxu0 %v365
    %495 = vmatprep.subr.bf16.mxu0 %v368
    %496 = vmatpush1.bf16.msra.mxu0 %v367
    %497 = vmatprep.subr.bf16.mxu0 %v370
    %498 = vmatpush1.bf16.msra.mxu0 %v369
    %499 = vmatprep.mubr.bf16.mxu0 %v140
    %500 = vmatmul.mubr.bf16.gmra.mrb[0].mxu0 %v139
    %v501 = vpop.f32.mrb[0].mxu0
    %v502 = vadd.f32 %v122, %v501
    %v503 = vpop.f32.mrb[0].mxu0
    %v504 = vadd.f32 %v126, %v503
    %v505 = vpop.f32.mrb[0].mxu0
    %v506 = vadd.f32 %v122, %v505
    %v507 = vpop.f32.mrb[0].mxu0
    %v508 = vadd.f32 %v126, %v507
    %509 = vdwg.mxu0
    %510 = vmatprep.subr.bf16.mxu0 %v372
    %511 = vmatpush1.bf16.msra.mxu0 %v371
    %512 = vmatprep.subr.bf16.mxu0 %v374
    %513 = vmatpush1.bf16.msra.mxu0 %v373
    %514 = vmatprep.subr.bf16.mxu0 %v376
    %515 = vmatpush1.bf16.msra.mxu0 %v375
    %516 = vmatprep.subr.bf16.mxu0 %v378
    %517 = vmatpush1.bf16.msra.mxu0 %v377
    %518 = vmatprep.subr.bf16.mxu0 %v380
    %519 = vmatpush1.bf16.msra.mxu0 %v379
    %520 = vmatprep.subr.bf16.mxu0 %v382
    %521 = vmatpush1.bf16.msra.mxu0 %v381
    %522 = vmatprep.subr.bf16.mxu0 %v384
    %523 = vmatpush1.bf16.msra.mxu0 %v383
    %524 = vmatprep.subr.bf16.mxu0 %v386
    %525 = vmatpush1.bf16.msra.mxu0 %v385
    %526 = vmatprep.subr.bf16.mxu0 %v388
    %527 = vmatpush1.bf16.msra.mxu0 %v387
    %528 = vmatprep.subr.bf16.mxu0 %v390
    %529 = vmatpush1.bf16.msra.mxu0 %v389
    %530 = vmatprep.subr.bf16.mxu0 %v392
    %531 = vmatpush1.bf16.msra.mxu0 %v391
    %532 = vmatprep.subr.bf16.mxu0 %v394
    %533 = vmatpush1.bf16.msra.mxu0 %v393
    %534 = vmatprep.subr.bf16.mxu0 %v396
    %535 = vmatpush1.bf16.msra.mxu0 %v395
    %536 = vmatprep.subr.bf16.mxu0 %v398
    %537 = vmatpush1.bf16.msra.mxu0 %v397
    %538 = vmatprep.subr.bf16.mxu0 %v400
    %539 = vmatpush1.bf16.msra.mxu0 %v399
    %540 = vmatprep.subr.bf16.mxu0 %v402
    %541 = vmatpush1.bf16.msra.mxu0 %v401
    %542 = vmatprep.mubr.bf16.mxu0 %v142
    %543 = vmatmul.mubr.bf16.gmra.mrb[0].mxu0 %v141
    %v544 = vpop.f32.mrb[0].mxu0
    %v545 = vadd.f32 %v502, %v544
    %v546 = vpop.f32.mrb[0].mxu0
    %v547 = vadd.f32 %v504, %v546
    %v548 = vpop.f32.mrb[0].mxu0
    %v549 = vadd.f32 %v506, %v548
    %v550 = vpop.f32.mrb[0].mxu0
    %v551 = vadd.f32 %v508, %v550
    %552 = vdwg.mxu0
    %v553 = vadd.f32 %v545, %v547
    %554 = vadd.xlane.f32.xlu0 %v553
    %v555 = vpop.xlane.xlu0 %554
    %v556 = vadd.f32 %v549, %v551
    %557 = vadd.xlane.f32.xlu0 %v556
    %v558 = vpop.xlane.xlu0 %557
    %v559 = vrcp.pop 256.0
    %v560 = vmul.f32 %v555, %v559
    %v561 = vmul.f32 %v558, %v559
    %v562 = vsub.f32 %v545, %v560
    %v563 = vsub.f32 %v547, %v560
    %v564 = vsub.f32 %v549, %v561
    %v565 = vsub.f32 %v551, %v561
    %v566 = vmul.f32 %v562, %v562
    %v567 = vmul.f32 %v563, %v563
    %v568 = vmul.f32 %v564, %v564
    %v569 = vmul.f32 %v565, %v565
    %v570 = vadd.f32 %v566, %v567
    %571 = vadd.xlane.f32.xlu0 %v570
    %v572 = vpop.xlane.xlu0 %571
    %v573 = vadd.f32 %v568, %v569
    %574 = vadd.xlane.f32.xlu0 %v573
    %v575 = vpop.xlane.xlu0 %574
    %v576 = vmul.f32 %v572, %v559
    %v577 = vmul.f32 %v575, %v559
    %v578 = vadd.f32 %v576, 1e-05
    %v579 = vadd.f32 %v577, 1e-05
    %v580 = vrsqrt.pop %v578
    %v581 = vrsqrt.pop %v579
    %v582 = vmul.f32 %v562, %v580
    %v583 = vmul.f32 %v563, %v580
    %v584 = vmul.f32 %v564, %v581
    %v585 = vmul.f32 %v565, %v581
    %v586 = vlaneseq
    %v587 = vshrl.u32 %v586, 7
    %v588 = vsub.s32 1, %v587
    %v589 = vrot.slane %v49, %v588
    %v590 = vlaneseq
    %v591 = vshrl.u32 %v590, 7
    %v592 = vsub.s32 1, %v591
    %v593 = vrot.slane %v50, %v592
    %v594 = vmul.f32 %v582, %v589
    %v595 = vmul.f32 %v583, %v593
    %v596 = vmul.f32 %v584, %v589
    %v597 = vmul.f32 %v585, %v593
    %v598 = vlaneseq
    %v599 = vshrl.u32 %v598, 7
    %v600 = vsub.s32 2, %v599
    %v601 = vrot.slane %v49, %v600
    %v602 = vlaneseq
    %v603 = vshrl.u32 %v602, 7
    %v604 = vsub.s32 2, %v603
    %v605 = vrot.slane %v50, %v604
    %v606 = vadd.f32 %v594, %v601
    %v607 = vadd.f32 %v595, %v605
    %v608 = vadd.f32 %v596, %v601
    %v609 = vadd.f32 %v597, %v605
    %v610 = vmul.f32 %v606, 0.5
    %v611 = vmul.f32 %v607, 0.5
    %v612 = vmul.f32 %v608, 0.5
    %v613 = vmul.f32 %v609, 0.5
    %v614 = vmul.f32 %v606, 0.70710677
    %v615 = vmul.f32 %v607, 0.70710677
    %v616 = vmul.f32 %v608, 0.70710677
    %v617 = vmul.f32 %v609, 0.70710677
    %v618 = verf.f32.pop %v614
    %v619 = verf.f32.pop %v615
    %v620 = verf.f32.pop %v616
    %v621 = verf.f32.pop %v617
    %v622 = vadd.f32 %v618, 1.0
    %v623 = vadd.f32 %v619, 1.0
    %v624 = vadd.f32 %v620, 1.0
    %v625 = vadd.f32 %v621, 1.0
    %v626 = vmul.f32 %v610, %v622
    %v627 = vmul.f32 %v611, %v623
    %v628 = vmul.f32 %v612, %v624
    %v629 = vmul.f32 %v613, %v625
    %v630 = vpack.c.bf16 %v628, %v626
    %v631 = vpack.c.bf16 %v629, %v627
    %v632 = vld [vmem:[#allocation4] sm:$0xf]
    %v633 = vld [vmem:[#allocation4 + $0x4] sm:$0xf]
    %v634 = vld [vmem:[#allocation4 + $0x8] sm:$0xf]
    %v635 = vld [vmem:[#allocation4 + $0xc] sm:$0xf]
    %v636 = vld [vmem:[#allocation4 + $0x10] sm:$0xf]
    %v637 = vld [vmem:[#allocation4 + $0x14] sm:$0xf]
    %v638 = vld [vmem:[#allocation4 + $0x18] sm:$0xf]
    %v639 = vld [vmem:[#allocation4 + $0x1c] sm:$0xf]
    %v640 = vld [vmem:[#allocation4 + $0x20] sm:$0xf]
    %v641 = vld [vmem:[#allocation4 + $0x24] sm:$0xf]
    %v642 = vld [vmem:[#allocation4 + $0x28] sm:$0xf]
    %v643 = vld [vmem:[#allocation4 + $0x2c] sm:$0xf]
    %v644 = vld [vmem:[#allocation4 + $0x30] sm:$0xf]
    %v645 = vld [vmem:[#allocation4 + $0x34] sm:$0xf]
    %v646 = vld [vmem:[#allocation4 + $0x38] sm:$0xf]
    %v647 = vld [vmem:[#allocation4 + $0x3c] sm:$0xf]
    %v648 = vld [vmem:[#allocation4 + $0x40] sm:$0xf]
    %v649 = vld [vmem:[#allocation4 + $0x44] sm:$0xf]
    %v650 = vld [vmem:[#allocation4 + $0x48] sm:$0xf]
    %v651 = vld [vmem:[#allocation4 + $0x4c] sm:$0xf]
    %v652 = vld [vmem:[#allocation4 + $0x50] sm:$0xf]
    %v653 = vld [vmem:[#allocation4 + $0x54] sm:$0xf]
    %v654 = vld [vmem:[#allocation4 + $0x58] sm:$0xf]
    %v655 = vld [vmem:[#allocation4 + $0x5c] sm:$0xf]
    %v656 = vld [vmem:[#allocation4 + $0x60] sm:$0xf]
    %v657 = vld [vmem:[#allocation4 + $0x64] sm:$0xf]
    %v658 = vld [vmem:[#allocation4 + $0x68] sm:$0xf]
    %v659 = vld [vmem:[#allocation4 + $0x6c] sm:$0xf]
    %v660 = vld [vmem:[#allocation4 + $0x70] sm:$0xf]
    %v661 = vld [vmem:[#allocation4 + $0x74] sm:$0xf]
    %v662 = vld [vmem:[#allocation4 + $0x78] sm:$0xf]
    %v663 = vld [vmem:[#allocation4 + $0x7c] sm:$0xf]
    %v664 = vlaneseq
    %v665 = vshrl.u32 %v664, 7
    %v666 = vsub.s32 3, %v665
    %v667 = vrot.slane %v49, %v666
    %v700 = vunpack.c.l.b16 %v632
    %v701 = vunpack.c.l.b16 %v633
    %v702 = vunpack.c.l.b16 %v634
    %v703 = vunpack.c.l.b16 %v635
    %v704 = vunpack.c.l.b16 %v636
    %v705 = vunpack.c.l.b16 %v637
    %v706 = vunpack.c.l.b16 %v638
    %v707 = vunpack.c.l.b16 %v639
    %v708 = vunpack.c.l.b16 %v640
    %v709 = vunpack.c.l.b16 %v641
    %v710 = vunpack.c.l.b16 %v642
    %v711 = vunpack.c.l.b16 %v643
    %v712 = vunpack.c.l.b16 %v644
    %v713 = vunpack.c.l.b16 %v645
    %v714 = vunpack.c.l.b16 %v646
    %v715 = vunpack.c.l.b16 %v647
    %v716 = vunpack.c.l.b16 %v648
    %v717 = vunpack.c.l.b16 %v649
    %v718 = vunpack.c.l.b16 %v650
    %v719 = vunpack.c.l.b16 %v651
    %v720 = vunpack.c.l.b16 %v652
    %v721 = vunpack.c.l.b16 %v653
    %v722 = vunpack.c.l.b16 %v654
    %v723 = vunpack.c.l.b16 %v655
    %v724 = vunpack.c.l.b16 %v656
    %v725 = vunpack.c.l.b16 %v657
    %v726 = vunpack.c.l.b16 %v658
    %v727 = vunpack.c.l.b16 %v659
    %v728 = vunpack.c.l.b16 %v660
    %v729 = vunpack.c.l.b16 %v661
    %v730 = vunpack.c.l.b16 %v662
    %v731 = vunpack.c.l.b16 %v663
    %v732 = vpack.c.b16 %v701, %v700
    %v733 = vpack.c.b16 %v703, %v702
    %v734 = vpack.c.b16 %v705, %v704
    %v735 = vpack.c.b16 %v707, %v706
    %v736 = vpack.c.b16 %v709, %v708
    %v737 = vpack.c.b16 %v711, %v710
    %v738 = vpack.c.b16 %v713, %v712
    %v739 = vpack.c.b16 %v715, %v714
    %v740 = vpack.c.b16 %v717, %v716
    %v741 = vpack.c.b16 %v719, %v718
    %v742 = vpack.c.b16 %v721, %v720
    %v743 = vpack.c.b16 %v723, %v722
    %v744 = vpack.c.b16 %v725, %v724
    %v745 = vpack.c.b16 %v727, %v726
    %v746 = vpack.c.b16 %v729, %v728
    %v747 = vpack.c.b16 %v731, %v730
    %764 = vmatprep.subr.bf16.mxu0 0
    %765 = vmatpush1.bf16.msra.mxu0 %v732
    %766 = vmatprep.subr.bf16.mxu0 0
    %767 = vmatpush1.bf16.msra.mxu0 %v733
    %768 = vmatprep.subr.bf16.mxu0 0
    %769 = vmatpush1.bf16.msra.mxu0 %v734
    %770 = vmatprep.subr.bf16.mxu0 0
    %771 = vmatpush1.bf16.msra.mxu0 %v735
    %772 = vmatprep.subr.bf16.mxu0 0
    %773 = vmatpush1.bf16.msra.mxu0 %v736
    %774 = vmatprep.subr.bf16.mxu0 0
    %775 = vmatpush1.bf16.msra.mxu0 %v737
    %776 = vmatprep.subr.bf16.mxu0 0
    %777 = vmatpush1.bf16.msra.mxu0 %v738
    %778 = vmatprep.subr.bf16.mxu0 0
    %779 = vmatpush1.bf16.msra.mxu0 %v739
    %780 = vmatprep.subr.bf16.mxu0 0
    %781 = vmatpush1.bf16.msra.mxu0 %v740
    %782 = vmatprep.subr.bf16.mxu0 0
    %783 = vmatpush1.bf16.msra.mxu0 %v741
    %784 = vmatprep.subr.bf16.mxu0 0
    %785 = vmatpush1.bf16.msra.mxu0 %v742
    %786 = vmatprep.subr.bf16.mxu0 0
    %787 = vmatpush1.bf16.msra.mxu0 %v743
    %788 = vmatprep.subr.bf16.mxu0 0
    %789 = vmatpush1.bf16.msra.mxu0 %v744
    %790 = vmatprep.subr.bf16.mxu0 0
    %791 = vmatpush1.bf16.msra.mxu0 %v745
    %792 = vmatprep.subr.bf16.mxu0 0
    %793 = vmatpush1.bf16.msra.mxu0 %v746
    %794 = vmatprep.subr.bf16.mxu0 0
    %795 = vmatpush1.bf16.msra.mxu0 %v747
    %796 = vmatprep.mubr.bf16.mxu0 %v631
    %797 = vmatmul.mubr.bf16.gmra.mrb[0].mxu0 %v630
    %v798 = vpop.f32.mrb[0].mxu0
    %v799 = vadd.f32 %v667, %v798
    %v800 = vpop.f32.mrb[0].mxu0
    %v801 = vpop.f32.mrb[0].mxu0
    %v802 = vadd.f32 %v667, %v801
    %v803 = vpop.f32.mrb[0].mxu0
    %804 = vdwg.mxu0
    %805 = vadd.xlane.f32.xlu0 %v799
    %v806 = vpop.xlane.xlu0 %805
    %807 = vadd.xlane.f32.xlu0 %v802
    %v808 = vpop.xlane.xlu0 %807
    %v809 = vrcp.pop 128.0
    %v810 = vmul.f32 %v806, %v809
    %v811 = vmul.f32 %v808, %v809
    %v812 = vsub.f32 %v799, %v810
    %v813 = vsub.f32 %v802, %v811
    %v814 = vmul.f32 %v812, %v812
    %v815 = vmul.f32 %v813, %v813
    %816 = vadd.xlane.f32.xlu0 %v814
    %v817 = vpop.xlane.xlu0 %816
    %818 = vadd.xlane.f32.xlu0 %v815
    %v819 = vpop.xlane.xlu0 %818
    %v820 = vmul.f32 %v817, %v809
    %v821 = vmul.f32 %v819, %v809
    %v822 = vadd.f32 %v820, 1e-05
    %v823 = vadd.f32 %v821, 1e-05
    %v824 = vrsqrt.pop %v822
    %v825 = vrsqrt.pop %v823
    %v826 = vmul.f32 %v812, %v824
    %v827 = vmul.f32 %v813, %v825
    %v828 = vlaneseq
    %v829 = vshrl.u32 %v828, 7
    %v830 = vsub.s32 4, %v829
    %v831 = vrot.slane %v49, %v830
    %v832 = vmul.f32 %v826, %v831
    %v833 = vmul.f32 %v827, %v831
    %v834 = vlaneseq
    %v835 = vshrl.u32 %v834, 7
    %v836 = vsub.s32 5, %v835
    %v837 = vrot.slane %v49, %v836
    %v838 = vadd.f32 %v832, %v837
    %v839 = vadd.f32 %v833, %v837
    %v840 = vmul.f32 %v838, 0.5
    %v841 = vmul.f32 %v839, 0.5
    %v842 = vmul.f32 %v838, 0.70710677
    %v843 = vmul.f32 %v839, 0.70710677
    %v844 = verf.f32.pop %v842
    %v845 = verf.f32.pop %v843
    %v846 = vadd.f32 %v844, 1.0
    %v847 = vadd.f32 %v845, 1.0
    %v848 = vmul.f32 %v840, %v846
    %v849 = vmul.f32 %v841, %v847
    %v850 = vpack.c.bf16 %v849, %v848
    %v851 = vld [vmem:[%s3] sm:$0xf]
    %v852 = vld [vmem:[%s3 + $0x4] sm:$0xf]
    %v853 = vld [vmem:[%s3 + $0x8] sm:$0xf]
    %v854 = vld [vmem:[%s3 + $0xc] sm:$0xf]
    %v855 = vld [vmem:[%s3 + $0x10] sm:$0xf]
    %v856 = vld [vmem:[%s3 + $0x14] sm:$0xf]
    %v857 = vld [vmem:[%s3 + $0x18] sm:$0xf]
    %v858 = vld [vmem:[%s3 + $0x1c] sm:$0xf]
    %v859 = vld [vmem:[%s3 + $0x20] sm:$0xf]
    %v860 = vld [vmem:[%s3 + $0x24] sm:$0xf]
    %v861 = vld [vmem:[%s3 + $0x28] sm:$0xf]
    %v862 = vld [vmem:[%s3 + $0x2c] sm:$0xf]
    %v863 = vld [vmem:[%s3 + $0x30] sm:$0xf]
    %v864 = vld [vmem:[%s3 + $0x34] sm:$0xf]
    %v865 = vld [vmem:[%s3 + $0x38] sm:$0xf]
    %v866 = vld [vmem:[%s3 + $0x3c] sm:$0xf]
    %v867 = vlaneseq
    %v868 = vshrl.u32 %v867, 7
    %v869 = vsub.s32 6, %v868
    %v870 = vrot.slane %v49, %v869
    %v887 = vunpack.c.l.b16 %v851
    %v888 = vunpack.c.l.b16 %v852
    %v889 = vunpack.c.l.b16 %v853
    %v890 = vunpack.c.l.b16 %v854
    %v891 = vunpack.c.l.b16 %v855
    %v892 = vunpack.c.l.b16 %v856
    %v893 = vunpack.c.l.b16 %v857
    %v894 = vunpack.c.l.b16 %v858
    %v895 = vunpack.c.l.b16 %v859
    %v896 = vunpack.c.l.b16 %v860
    %v897 = vunpack.c.l.b16 %v861
    %v898 = vunpack.c.l.b16 %v862
    %v899 = vunpack.c.l.b16 %v863
    %v900 = vunpack.c.l.b16 %v864
    %v901 = vunpack.c.l.b16 %v865
    %v902 = vunpack.c.l.b16 %v866
    %v903 = vpack.c.b16 %v888, %v887
    %v904 = vpack.c.b16 %v890, %v889
    %v905 = vpack.c.b16 %v892, %v891
    %v906 = vpack.c.b16 %v894, %v893
    %v907 = vpack.c.b16 %v896, %v895
    %v908 = vpack.c.b16 %v898, %v897
    %v909 = vpack.c.b16 %v900, %v899
    %v910 = vpack.c.b16 %v902, %v901
    %919 = vmatprep.subr.bf16.mxu0 0
    %920 = vmatpush1.bf16.msra.mxu0 %v903
    %921 = vmatprep.subr.bf16.mxu0 0
    %922 = vmatpush1.bf16.msra.mxu0 %v904
    %923 = vmatprep.subr.bf16.mxu0 0
    %924 = vmatpush1.bf16.msra.mxu0 %v905
    %925 = vmatprep.subr.bf16.mxu0 0
    %926 = vmatpush1.bf16.msra.mxu0 %v906
    %927 = vmatprep.subr.bf16.mxu0 0
    %928 = vmatpush1.bf16.msra.mxu0 %v907
    %929 = vmatprep.subr.bf16.mxu0 0
    %930 = vmatpush1.bf16.msra.mxu0 %v908
    %931 = vmatprep.subr.bf16.mxu0 0
    %932 = vmatpush1.bf16.msra.mxu0 %v909
    %933 = vmatprep.subr.bf16.mxu0 0
    %934 = vmatpush1.bf16.msra.mxu0 %v910
    %935 = vmatprep.subr.bf16.mxu0 0
    %936 = vmatpush1.bf16.msra.mxu0 0
    %937 = vmatprep.subr.bf16.mxu0 0
    %938 = vmatpush1.bf16.msra.mxu0 0
    %939 = vmatprep.subr.bf16.mxu0 0
    %940 = vmatpush1.bf16.msra.mxu0 0
    %941 = vmatprep.subr.bf16.mxu0 0
    %942 = vmatpush1.bf16.msra.mxu0 0
    %943 = vmatprep.subr.bf16.mxu0 0
    %944 = vmatpush1.bf16.msra.mxu0 0
    %945 = vmatprep.subr.bf16.mxu0 0
    %946 = vmatpush1.bf16.msra.mxu0 0
    %947 = vmatprep.subr.bf16.mxu0 0
    %948 = vmatpush1.bf16.msra.mxu0 0
    %949 = vmatprep.subr.bf16.mxu0 0
    %950 = vmatpush1.bf16.msra.mxu0 0
    %951 = vmatprep.mubr.bf16.mxu0 0
    %952 = vmatmul.mubr.bf16.gmra.mrb[0].mxu0 %v850
    %v953 = vpop.f32.mrb[0].mxu0
    %v954 = vadd.f32 %v870, %v953
    %v955 = vpop.f32.mrb[0].mxu0
    %v956 = vpop.f32.mrb[0].mxu0
    %v957 = vadd.f32 %v870, %v956
    %v958 = vpop.f32.mrb[0].mxu0
    %959 = vdwg.mxu0
    %v960 = vxor.u32 %v954, 2147483648
    %v961 = vxor.u32 %v957, 2147483648
    %v962 = vmul.f32 %v960, 1.442695
    %v963 = vpow.pop %v962
    %v964 = vmul.f32 %v961, 1.442695
    %v965 = vpow.pop %v964
    %v966 = vadd.f32 %v963, 1.0
    %v967 = vadd.f32 %v965, 1.0
    %v968 = vrcp.pop %v966
    %v969 = vmul.f32 1.0, %v968
    %v970 = vrcp.pop %v967
    %v971 = vmul.f32 1.0, %v970
    %972 = vst [vmem:[%s5] sm:$0xff] %v969
    %973 = vst [vmem:[%s5 + $0x8] sm:$0xff] %v971
    // Predicated region
    $region30: #{defense_mechanisms_forward.1} parent=1 // pred_check
      _
    $region31: #{defense_mechanisms_forward.1} parent=1 // pred_check_branch
      %975 = sbr.rel (0) target = $region33
    $region32: #{defense_mechanisms_forward.1} parent=1 // pred_region
      _
    $region33: #{defense_mechanisms_forward.1} parent=1 // pred_fallthru
      _
    // Predicated region
    $region34: #{defense_mechanisms_forward.1} parent=1 // pred_check
      _
    $region35: #{defense_mechanisms_forward.1} parent=1 // pred_check_branch
      %977 = sbr.rel (0) target = $region37
    $region36: #{defense_mechanisms_forward.1} parent=1 // pred_region
      _
    $region37: #{defense_mechanisms_forward.1} parent=1 // pred_fallthru
      _
    %978 = vsyncpa [#allocation3], 1
    %979 = vsyncpa [#allocation5], 1

</llo_original>
